<compile_context>
chip_gen: v7x
topology: tpu7x:2x2x1
jax: 0.10.0
libtpu: 0.0.40
codegen_flags: <defaults>
</compile_context>

<pallas_src>
import functools
import math

import jax
import jax.numpy as jnp
from jax.experimental import pallas as pl
from jax.experimental.pallas import tpu as pltpu

# ----------------------------- small synthetic config -----------------------------
NUM_CHANNELS = 3
RESOLUTION = 16          # resolution_log2 = 4  -> blocks at res 4, 3 ; last block at 4x4
FMAP_BASE = 64
FMAP_MIN = 8
FMAP_MAX = 32
MBSTD_GROUP = 4
MBSTD_FEAT = 1
LRELU_SLOPE = 0.2
LRELU_GAIN = math.sqrt(2.0)
INV_SQRT2 = 1.0 / math.sqrt(2.0)

CPAD = 128               # lane-dense channel padding for every activation / weight dim


def _nf(stage):
    return max(FMAP_MIN, min(FMAP_MAX, int(FMAP_BASE / 2.0 ** stage)))


def _lrelu_gain(x):
    # fused_leaky_relu epilogue: LeakyReLU(0.2) * sqrt(2), always in f32
    return jnp.where(x >= 0.0, x, jnp.float32(LRELU_SLOPE) * x) * jnp.float32(LRELU_GAIN)


# ----------------------------- Pallas kernels -----------------------------
def _matmul_kernel(x_ref, w_ref, b_ref, o_ref, *, activate):
    """(tm,K)x(K,N) tile: MXU matmul (bf16 operands, f32 acc) + bias (+ lrelu*sqrt2)."""
    acc = jnp.dot(x_ref[...], w_ref[...], preferred_element_type=jnp.float32)
    acc = acc + b_ref[...]
    if activate:
        acc = _lrelu_gain(acc)
    o_ref[...] = acc.astype(o_ref.dtype)


def _conv3x3_s1_kernel(x_ref, w_ref, b_ref, o_ref, *, ho, wo):
    """3x3 / stride-1 / pad-1 conv for one image, tap-accumulated from the padded NHWC
    input in VMEM (no materialized im2col), fused bias + LeakyReLU*sqrt(2)."""
    cin = x_ref.shape[-1]
    cout = o_ref.shape[-1]
    acc = jnp.zeros((ho * wo, cout), jnp.float32)
    for kh in range(3):
        for kw in range(3):
            win = x_ref[0, kh:kh + ho, kw:kw + wo, :]              # (ho, wo, cin) bf16
            acc = acc + jnp.dot(win.reshape(ho * wo, cin), w_ref[kh, kw],
                                preferred_element_type=jnp.float32)
    acc = _lrelu_gain(acc + b_ref[...])
    o_ref[0] = acc.astype(o_ref.dtype)


def _dblock_down_kernel(y_ref, xs_ref, w_ref, b_ref, ws_ref, o_ref, *, ho, wo):
    """Fused resnet DiscriminatorBlock tail for one image:
         main = lrelu(conv3x3_stride2(y) + b) * sqrt(2)
         skip = conv1x1_stride2(block_input)          (no bias / activation)
         out  = (main + skip) / sqrt(2)
       y_ref: (1,4,Hp/2,Wp/2,C) = padded conv1 output split into its 4 stride-2 phases,
       xs_ref: (1,Ho*Wo,C)      = block input subsampled [::2,::2]."""
    cin = y_ref.shape[-1]
    cout = o_ref.shape[-1]
    acc = jnp.zeros((ho * wo, cout), jnp.float32)
    for kh in range(3):
        for kw in range(3):
            ph = (kh % 2) * 2 + (kw % 2)
            win = y_ref[0, ph, kh // 2:kh // 2 + ho, kw // 2:kw // 2 + wo, :]
            acc = acc + jnp.dot(win.reshape(ho * wo, cin), w_ref[kh, kw],
                                preferred_element_type=jnp.float32)
    main = _lrelu_gain(acc + b_ref[...])
    skip = jnp.dot(xs_ref[0], ws_ref[...], preferred_element_type=jnp.float32)
    o_ref[0] = ((main + skip) * jnp.float32(INV_SQRT2)).astype(o_ref.dtype)


def _head_kernel(x_ref, w1_ref, b1_ref, w2_ref, b2_ref, o_ref):
    """fc1 (+bias, lrelu*sqrt2) fused with the final fc2(->1) as a VPU/XLU lane reduction
    (avoids a separate N=1 matmul launch and its masked-store-only output)."""
    h = jnp.dot(x_ref[...], w1_ref[...], preferred_element_type=jnp.float32)
    h = _lrelu_gain(h + b1_ref[...])
    o_ref[...] = jnp.sum(h * w2_ref[...], axis=-1, keepdims=True) + b2_ref[...]


# ----------------------------- pallas_call wrappers -----------------------------
def matmul_bias_act(x, w, b, *, activate, out_dtype=jnp.bfloat16):
    """x:(M,K) bf16, w:(K,N) bf16, b:(1,N) f32 -> (M,N). M-tiled (padded via cdiv, never
    an unbounded full-M fallback). No fake residual input.
    For production StyleGAN sizes add K/N grid axes (tk~256-512, tn=128 v5e / 256 v6e-v7x)."""
    m, k = x.shape
    n_out = w.shape[1]
    tm = 256 if m >= 256 else -(-m // 8) * 8
    mp = -(-m // tm) * tm
    if mp != m:
        x = jnp.pad(x, ((0, mp - m), (0, 0)))
    out = pl.pallas_call(
        functools.partial(_matmul_kernel, activate=activate),
        out_shape=jax.ShapeDtypeStruct((mp, n_out), out_dtype),
        grid=(mp // tm,),
        in_specs=[
            pl.BlockSpec((tm, k), lambda i: (i, 0)),
            pl.BlockSpec((k, n_out), lambda i: (0, 0)),
            pl.BlockSpec((1, n_out), lambda i: (0, 0)),
        ],
        out_specs=pl.BlockSpec((tm, n_out), lambda i: (i, 0)),
        compiler_params=pltpu.CompilerParams(dimension_semantics=("parallel",)),
    )(x, w, b)
    return out if mp == m else out[:m]


def conv3x3_act(x, w, b):
    """x:(N,H,W,CPAD) bf16, w:(3,3,CPAD,CPAD) bf16, b:(1,CPAD) f32.
    Stride-1 / pad-1 conv, fused bias + lrelu*sqrt2. Returns (N,H,W,CPAD) bf16."""
    n, h, w_sp, c = x.shape
    cout = w.shape[-1]
    xp = jnp.pad(x, ((0, 0), (1, 1), (1, 1), (0, 0)))
    hp, wp = h + 2, w_sp + 2
    out = pl.pallas_call(
        functools.partial(_conv3x3_s1_kernel, ho=h, wo=w_sp),
        out_shape=jax.ShapeDtypeStruct((n, h * w_sp, cout), jnp.bfloat16),
        grid=(n,),
        in_specs=[
            pl.BlockSpec((1, hp, wp, c), lambda i: (i, 0, 0, 0)),
            pl.BlockSpec((3, 3, c, cout), lambda i: (0, 0, 0, 0)),
            pl.BlockSpec((1, cout), lambda i: (0, 0)),
        ],
        out_specs=pl.BlockSpec((1, h * w_sp, cout), lambda i: (i, 0, 0)),
        compiler_params=pltpu.CompilerParams(dimension_semantics=("parallel",)),
    )(xp, w, b)
    return out.reshape(n, h, w_sp, cout)


def disc_block(x, p_blk):
    """Full resnet DiscriminatorBlock: conv3x3(act) then ONE fused kernel for
    conv3x3-down + bias + lrelu*sqrt2 + 1x1-down skip(block input) + (main+skip)/sqrt2."""
    y = conv3x3_act(x, p_blk["c1_w"], p_blk["c1_b"])
    n, h, w_sp, c = y.shape
    ho, wo = h // 2, w_sp // 2
    cout = p_blk["c2_w"].shape[-1]
    # phase-split the padded conv1 output so every stride-2 tap is a contiguous slice
    yp = jnp.pad(y, ((0, 0), (1, 1), (1, 1), (0, 0)))
    hp2, wp2 = (h + 2) // 2, (w_sp + 2) // 2
    yph = jnp.transpose(yp.reshape(n, hp2, 2, wp2, 2, c), (0, 2, 4, 1, 3, 5))
    yph = yph.reshape(n, 4, hp2, wp2, c)
    # skip-branch input: block input subsampled (1x1 stride-2 conv == subsample + matmul)
    xs = x[:, ::2, ::2, :].reshape(n, ho * wo, c)
    out = pl.pallas_call(
        functools.partial(_dblock_down_kernel, ho=ho, wo=wo),
        out_shape=jax.ShapeDtypeStruct((n, ho * wo, cout), jnp.bfloat16),
        grid=(n,),
        in_specs=[
            pl.BlockSpec((1, 4, hp2, wp2, c), lambda i: (i, 0, 0, 0, 0)),
            pl.BlockSpec((1, ho * wo, c), lambda i: (i, 0, 0)),
            pl.BlockSpec((3, 3, c, cout), lambda i: (0, 0, 0, 0)),
            pl.BlockSpec((1, cout), lambda i: (0, 0)),
            pl.BlockSpec((c, cout), lambda i: (0, 0)),
        ],
        out_specs=pl.BlockSpec((1, ho * wo, cout), lambda i: (i, 0, 0)),
        compiler_params=pltpu.CompilerParams(dimension_semantics=("parallel",)),
    )(yph, xs, p_blk["c2_w"], p_blk["c2_b"], p_blk["skip_w"])
    return out.reshape(n, ho, wo, cout)


def fc_head(x, w1, b1, w2, b2):
    """x:(B,K) bf16 -> (B,1) f32. Single kernel: fc1 + lrelu*sqrt2 + fc2(->1)."""
    bsz, _ = x.shape
    bp = -(-bsz // 8) * 8
    if bp != bsz:
        x = jnp.pad(x, ((0, bp - bsz), (0, 0)))
    vmem = pl.BlockSpec(memory_space=pltpu.MemorySpace.VMEM)
    out = pl.pallas_call(
        _head_kernel,
        out_shape=jax.ShapeDtypeStruct((bp, 1), jnp.float32),
        in_specs=[vmem] * 5,
        out_specs=vmem,
    )(x, w1, b1, w2, b2)
    return out[:bsz]


# ----------------------------- params -----------------------------
def make_params(key):
    """Raw parameters in PyTorch layouts: conv (Cout,Cin,kh,kw), linear (out,in)."""
    keys = iter(jax.random.split(key, 64))

    def w(shape):
        return jax.random.normal(next(keys), shape, jnp.float32)

    def b(n):
        return 0.1 * jax.random.normal(next(keys), (n,), jnp.float32)

    res_log2 = int(math.log2(RESOLUTION))
    params = {}
    c0 = _nf(res_log2 - 1)
    params["init"] = {"w": w((c0, NUM_CHANNELS, 1, 1)), "b": b(c0)}

    blocks = []
    for res in range(res_log2, 2, -1):
        cin, cout = _nf(res - 1), _nf(res - 2)
        blocks.append({
            "conv1_w": w((cin, cin, 3, 3)), "conv1_b": b(cin),
            "conv2_w": w((cout, cin, 3, 3)), "conv2_b": b(cout),
            "skip_w": w((cout, cin, 1, 1)),
        })
    params["blocks"] = blocks

    cl, cf = _nf(1), _nf(0)
    params["last"] = {
        "conv_w": w((cl, cl + MBSTD_FEAT, 3, 3)), "conv_b": b(cl),
        "fc1_w": w((cf, cl * 4 * 4)), "fc1_b": b(cf),
        "fc2_w": w((1, cf)), "fc2_b": b(1),
    }
    return params


def prepare_params(raw):
    """One-time weight prep (perf review item): fold the equalized-lr scale, transpose to
    matmul layout, zero-pad channel/feature dims to CPAD and pre-cast MXU operands to bf16."""
    def conv_w(w_pt):                                   # (Cout,Cin,3,3) -> (3,3,CPAD,CPAD) bf16
        cout, cin, k, _ = w_pt.shape
        scale = 1.0 / math.sqrt(cin * k * k)
        wm = jnp.transpose(w_pt, (2, 3, 1, 0)) * scale
        wm = jnp.pad(wm, ((0, 0), (0, 0), (0, CPAD - cin), (0, CPAD - cout)))
        return wm.astype(jnp.bfloat16)

    def w1x1(w_pt):                                     # (Cout,Cin,1,1) -> (CPAD,CPAD) bf16
        cout, cin = w_pt.shape[0], w_pt.shape[1]
        wm = w_pt[:, :, 0, 0].T * (1.0 / math.sqrt(cin))
        wm = jnp.pad(wm, ((0, CPAD - cin), (0, CPAD - cout)))
        return wm.astype(jnp.bfloat16)

    def bias(b_pt):                                     # (C,) -> (1,CPAD) f32
        return jnp.pad(b_pt, (0, CPAD - b_pt.shape[0])).reshape(1, CPAD).astype(jnp.float32)

    p = {"init_w": w1x1(raw["init"]["w"]), "init_b": bias(raw["init"]["b"]), "blocks": []}
    for blk in raw["blocks"]:
        p["blocks"].append({
            "c1_w": conv_w(blk["conv1_w"]), "c1_b": bias(blk["conv1_b"]),
            "c2_w": conv_w(blk["conv2_w"]), "c2_b": bias(blk["conv2_b"]),
            "skip_w": w1x1(blk["skip_w"]),
        })
    last = raw["last"]
    p["last_conv_w"] = conv_w(last["conv_w"])
    p["last_conv_b"] = bias(last["conv_b"])
    f1_out, f1_in = last["fc1_w"].shape
    p["fc1_w"] = jnp.pad(last["fc1_w"].T * (1.0 / math.sqrt(f1_in)),
                         ((0, 0), (0, CPAD - f1_out))).astype(jnp.bfloat16)
    p["fc1_b"] = bias(last["fc1_b"])
    p["fc2_w"] = jnp.pad(last["fc2_w"] * (1.0 / math.sqrt(f1_out)),
                         ((0, 0), (0, CPAD - f1_out))).astype(jnp.float32)
    p["fc2_b"] = last["fc2_b"].reshape(1, 1).astype(jnp.float32)
    p["c_mbstd_in"] = int(last["conv_w"].shape[1]) - MBSTD_FEAT   # real channels at mbstd
    p["c_last_out"] = int(last["conv_w"].shape[0])                # real channels into fc1
    return p


# ----------------------------- forward -----------------------------
def discriminator_forward(p, imgs_nchw):
    x = jnp.transpose(imgs_nchw, (0, 2, 3, 1)).astype(jnp.float32)        # NCHW -> NHWC
    n, h, w, c = x.shape
    # lane-dense channel padding: activations carry CPAD channels end-to-end
    x = jnp.pad(x, ((0, 0), (0, 0), (0, 0), (0, CPAD - c))).astype(jnp.bfloat16)

    # init 1x1 conv (+bias, lrelu*sqrt2) as a flat matmul over pixels
    y = matmul_bias_act(x.reshape(n * h * w, CPAD), p["init_w"], p["init_b"], activate=True)
    x = y.reshape(n, h, w, CPAD)

    # resnet blocks
    for blk in p["blocks"]:
        x = disc_block(x, blk)

    # ---------------- last block ----------------
    n, h, w, _ = x.shape
    c_real = p["c_mbstd_in"]
    feats = x[..., :c_real]                                               # (N,H,W,C) bf16
    # minibatch-stddev: trivial reduction, kept in plain jnp (not worth a kernel launch)
    group = min(MBSTD_GROUP, n)
    while n % group:                                                      # divisibility guard
        group -= 1
    f32 = feats.astype(jnp.float32).reshape(group, n // group, h * w * c_real)
    std = jnp.sqrt(jnp.var(f32, axis=0) + 1e-8).mean(axis=-1)             # (n/group,)
    std = jnp.tile(std, (group,))                                         # (N,)  b = g*num_per+m
    std_map = jnp.broadcast_to(std[:, None, None, None], (n, h, w, 1)).astype(jnp.bfloat16)
    x = jnp.concatenate([feats, std_map], axis=-1)                        # (N,H,W,C+1)
    x = jnp.pad(x, ((0, 0), (0, 0), (0, 0), (0, CPAD - (c_real + 1))))

    x = conv3x3_act(x, p["last_conv_w"], p["last_conv_b"])                # (N,4,4,CPAD)
    c_out = p["c_last_out"]
    flat = jnp.transpose(x[..., :c_out], (0, 3, 1, 2)).reshape(n, c_out * h * w)  # NCHW flatten
    return fc_head(flat.astype(jnp.bfloat16), p["fc1_w"], p["fc1_b"], p["fc2_w"], p["fc2_b"])


# ----------------------------- main -----------------------------
if __name__ == "__main__":
    key = jax.random.PRNGKey(0)
    pkey, xkey = jax.random.split(key)
    params = prepare_params(make_params(pkey))
    x = jax.random.normal(xkey, (2, NUM_CHANNELS, RESOLUTION, RESOLUTION), jnp.float32)
    out = discriminator_forward(params, x)
    jax.block_until_ready(out)
    assert out.shape == (2, 1), out.shape
    print("KERNEL_OK")
</pallas_src>

<mosaic_0001>
module attributes {stable_mosaic.version = 11 : i64} {
  func.func @_matmul_kernel(%arg0: i32, %arg1: memref<256x128xbf16, #tpu.memory_space<vmem>>, %arg2: memref<128x128xbf16, #tpu.memory_space<vmem>>, %arg3: memref<1x128xf32, #tpu.memory_space<vmem>>, %arg4: memref<256x128xbf16, #tpu.memory_space<vmem>>) attributes {dimension_semantics = [#tpu.dimension_semantics<parallel>], iteration_bounds = array<i64: 2>, scalar_prefetch = 0 : i64, scratch_operands = 0 : i64, tpu.core_type = #tpu.core_type<tc>, window_params = [{transform_indices = @transform_0, window_bounds = array<i64: 256, 128>}, {pipeline_mode = #tpu.pipeline_mode<synchronous>, transform_indices = @transform_1, window_bounds = array<i64: 128, 128>}, {pipeline_mode = #tpu.pipeline_mode<synchronous>, transform_indices = @transform_2, window_bounds = array<i64: 1, 128>}, {transform_indices = @transform_3, window_bounds = array<i64: 256, 128>}]} {
    %c0 = arith.constant 0 : index
    %c0_0 = arith.constant 0 : index
    %0 = vector.load %arg1[%c0, %c0_0] : memref<256x128xbf16, #tpu.memory_space<vmem>>, vector<256x128xbf16>
    %c0_1 = arith.constant 0 : index
    %c0_2 = arith.constant 0 : index
    %1 = vector.load %arg2[%c0_1, %c0_2] : memref<128x128xbf16, #tpu.memory_space<vmem>>, vector<128x128xbf16>
    %cst = arith.constant dense<0.000000e+00> : vector<256x128xf32>
    %2 = tpu.matmul %0, %1, %cst {dimension_numbers = #tpu.dot_dimension_numbers<[1], [0], [0], [1], [0, 0, 1, 1], [], []>} : vector<256x128xbf16>, vector<128x128xbf16>, vector<256x128xf32> -> vector<256x128xf32>
    %c0_3 = arith.constant 0 : index
    %c0_4 = arith.constant 0 : index
    %3 = vector.load %arg3[%c0_3, %c0_4] : memref<1x128xf32, #tpu.memory_space<vmem>>, vector<1x128xf32>
    %4 = vector.broadcast %3 : vector<1x128xf32> to vector<256x128xf32>
    %5 = arith.addf %2, %4 : vector<256x128xf32>
    %cst_5 = arith.constant 0.000000e+00 : f32
    %6 = vector.broadcast %cst_5 : f32 to vector<256x128xf32>
    %7 = arith.cmpf oge, %5, %6 : vector<256x128xf32>
    %cst_6 = arith.constant 2.000000e-01 : f32
    %8 = vector.broadcast %cst_6 : f32 to vector<256x128xf32>
    %9 = arith.mulf %8, %5 : vector<256x128xf32>
    %10 = arith.select %7, %5, %9 : vector<256x128xi1>, vector<256x128xf32>
    %cst_7 = arith.constant 1.41421354 : f32
    %11 = vector.broadcast %cst_7 : f32 to vector<256x128xf32>
    %12 = arith.mulf %10, %11 : vector<256x128xf32>
    %13 = arith.truncf %12 : vector<256x128xf32> to vector<256x128xbf16>
    %c0_8 = arith.constant 0 : index
    %c0_9 = arith.constant 0 : index
    %14 = vector.load %arg4[%c0_8, %c0_9] : memref<256x128xbf16, #tpu.memory_space<vmem>>, vector<256x128xbf16>
    tpu.vector_store %arg4[%c0_8, %c0_9], %13 {strides = array<i32>} : memref<256x128xbf16, #tpu.memory_space<vmem>>, vector<256x128xbf16>,
    return
  }
  func.func @transform_0(%arg0: i32) -> (i32, i32) {
    %c0_i32 = arith.constant 0 : i32
    %c0_i32_0 = arith.constant 0 : i32
    return %arg0, %c0_i32 : i32, i32
  }
  func.func @transform_1(%arg0: i32) -> (i32, i32) {
    %c0_i32 = arith.constant 0 : i32
    %c0_i32_0 = arith.constant 0 : i32
    %c0_i32_1 = arith.constant 0 : i32
    return %c0_i32, %c0_i32_0 : i32, i32
  }
  func.func @transform_2(%arg0: i32) -> (i32, i32) {
    %c0_i32 = arith.constant 0 : i32
    %c0_i32_0 = arith.constant 0 : i32
    %c0_i32_1 = arith.constant 0 : i32
    return %c0_i32, %c0_i32_0 : i32, i32
  }
  func.func @transform_3(%arg0: i32) -> (i32, i32) {
    %c0_i32 = arith.constant 0 : i32
    %c0_i32_0 = arith.constant 0 : i32
    return %arg0, %c0_i32 : i32, i32
  }
}

</mosaic_0001>

<llo_original>
// kernel: tpu_custom_call.1
$region0: #{tpu_custom_call.1}
  #allocation0 [shape = 'u32[]', space=smem, size = 0x4, offset = 0x4, fixed_abs, tag = 'smem constant byte address 0x4 - core index']
  #allocation1 [shape = 'u32[144,128]{1,0:T(1,128)}', space=vmem, size = 0x12000, scoped, tag = 'internal scratch']
  %s0 = inlined_call_operand.hbm [shape: bf16[512,128], index: 0, kind: input, shape index: {}]
  %s1 = inlined_call_operand.hbm [shape: bf16[128,128], index: 1, kind: input, shape index: {}]
  %s2 = inlined_call_operand.vmem [shape: f32[1,128], index: 2, kind: input, shape index: {}]
  %s3 = inlined_call_operand.hbm [shape: bf16[512,128], index: 3, kind: output, shape index: {}]
  %s4 = sld [smem:[#allocation0]]
  $region53: #{tpu_custom_call.1} parent=0
    _
  %s6 = ssub.s32 1, %s4
  %s7 = scalar_select 0, %s6, %s4
  $region1: #{tpu_custom_call.1} parent=0
    #allocation2 [shape = 'u8[131072]{0}', space=vmem, size = 0x20000, scoped, tag = 'input window, operand 0']
    #allocation3 [shape = 's32[2]{0}', space=sflag, size = 0x8, scoped, tag = 'scoped memory for tpu_custom_call.1']
    #allocation4 [shape = 's32[2]{0}', space=sflag, size = 0x8, scoped, tag = 'scoped memory for tpu_custom_call.1']
    #allocation5 [shape = 'u8[32768]{0}', space=vmem, size = 0x8000, scoped, tag = 'input window, operand 1, single buffered']
    #allocation6 [shape = 's32[1]{0}', space=sflag, size = 0x4, scoped, tag = 'scoped memory for tpu_custom_call.1']
    #allocation7 [shape = 'u8[131072]{0}', space=vmem, size = 0x20000, scoped, tag = 'output window, operand 0']
    %8 = vsyncpa [#allocation3], 0
    %s9 = scalar_lea.sflag [#allocation3], 1
    %10 = vsyncpa %s9, 0
    %11 = vsyncpa [#allocation6], 0
    %12 = vsyncpa [#allocation4], 0
    %s13 = scalar_lea.sflag [#allocation4], 1
    %14 = vsyncpa %s13, 0
    loop: start=0, step=1, limit=4
    $region2: #{tpu_custom_call.1} parent=1 // loop_pre_header
      _
    $region3: #{tpu_custom_call.1} parent=1 // loop_header
      %s16 = sphi 0, %s20
      %p17 = scmp.ge.s32.totalorder %s16, 4
      %s26 = sphi 0, %s28
      %s29 = sphi 0, %s26
      %s30 = sphi 0, %s29
      %s46 = sphi 0, %s30
      %s50 = sphi 0, %s50
      %s52 = sphi 0, %s50
      %s53 = sphi 0, %s52
      %s67 = sphi 0, %s53
      %s71 = sphi 0, %s71
      %s73 = sphi 0, %s71
      %s74 = sphi 0, %s73
      %s88 = sphi 0, %s74
      %s94 = sphi 0, %s96
      %s97 = sphi 0, %s94
      %s98 = sphi 0, %s97
      %s114 = sphi 0, %s98
    $region4: #{tpu_custom_call.1} parent=1 // loop_header_branch
      %19 = sbr.rel (%p17) target = $region8
    $region5: #{tpu_custom_call.1} parent=1 // loop_body
      %s21 = ssub.s32 %s16, 1
      %s22 = ssub.s32 %s16, 2
      %s23 = sadd.s32 %s16, 1
      %s24 = ssub.s32 %s16, %s23
      %p25 = scmp.eq.s32.totalorder %s24, 0
      %s27 = sadd.s32 %s26, 1
      %s28 = scalar_select %p25, %s26, %s27
      %p31 = pneg %p25
      %p32 = scmp.eq.s32.totalorder %s16, 1
      %p33 = por %p31, %p32
      %p34 = scmp.ne.s32.totalorder %s26, %s29
      %p35 = scmp.eq.s32.totalorder %s16, 0
      %p36 = por %p34, %p35
      %p37 = scmp.ne.s32.totalorder %s26, %s29
      %p38 = scmp.eq.s32.totalorder %s21, 1
      %p39 = por %p37, %p38
      %p40 = scmp.ne.s32.totalorder %s29, %s30
      %p41 = scmp.eq.s32.totalorder %s21, 0
      %p42 = por %p40, %p41
      %p43 = scmp.ne.s32.totalorder %s29, %s30
      %p44 = scmp.eq.s32.totalorder %s22, 1
      %p45 = por %p43, %p44
      %p47 = scmp.ne.s32.totalorder %s30, %s46
      %p48 = scmp.eq.s32.totalorder %s22, 0
      %p49 = por %p47, %p48
      %s51 = sadd.s32 %s50, 1
      %p54 = scmp.eq.s32.totalorder %s16, 1
      %p55 = scmp.ne.s32.totalorder %s50, %s52
      %p56 = scmp.eq.s32.totalorder %s16, 0
      %p57 = por %p55, %p56
      %p58 = scmp.ne.s32.totalorder %s50, %s52
      %p59 = scmp.eq.s32.totalorder %s21, 1
      %p60 = por %p58, %p59
      %p61 = scmp.ne.s32.totalorder %s52, %s53
      %p62 = scmp.eq.s32.totalorder %s21, 0
      %p63 = por %p61, %p62
      %p64 = scmp.ne.s32.totalorder %s52, %s53
      %p65 = scmp.eq.s32.totalorder %s22, 1
      %p66 = por %p64, %p65
      %p68 = scmp.ne.s32.totalorder %s53, %s67
      %p69 = scmp.eq.s32.totalorder %s22, 0
      %p70 = por %p68, %p69
      %s72 = sadd.s32 %s71, 1
      %p75 = scmp.eq.s32.totalorder %s16, 1
      %p76 = scmp.ne.s32.totalorder %s71, %s73
      %p77 = scmp.eq.s32.totalorder %s16, 0
      %p78 = por %p76, %p77
      %p79 = scmp.ne.s32.totalorder %s71, %s73
      %p80 = scmp.eq.s32.totalorder %s21, 1
      %p81 = por %p79, %p80
      %p82 = scmp.ne.s32.totalorder %s73, %s74
      %p83 = scmp.eq.s32.totalorder %s21, 0
      %p84 = por %p82, %p83
      %p85 = scmp.ne.s32.totalorder %s73, %s74
      %p86 = scmp.eq.s32.totalorder %s22, 1
      %p87 = por %p85, %p86
      %p89 = scmp.ne.s32.totalorder %s74, %s88
      %p90 = scmp.eq.s32.totalorder %s22, 0
      %p91 = por %p89, %p90
      %s92 = ssub.s32 %s16, %s23
      %p93 = scmp.eq.s32.totalorder %s92, 0
      %s95 = sadd.s32 %s94, 1
      %s96 = scalar_select %p93, %s94, %s95
      %p99 = pneg %p93
      %p100 = scmp.eq.s32.totalorder %s16, 1
      %p101 = por %p99, %p100
      %p102 = scmp.ne.s32.totalorder %s94, %s97
      %p103 = scmp.eq.s32.totalorder %s16, 0
      %p104 = por %p102, %p103
      %p105 = scmp.ne.s32.totalorder %s94, %s97
      %p106 = scmp.eq.s32.totalorder %s21, 1
      %p107 = por %p105, %p106
      %p108 = scmp.ne.s32.totalorder %s97, %s98
      %p109 = scmp.eq.s32.totalorder %s21, 0
      %p110 = por %p108, %p109
      %p111 = scmp.ne.s32.totalorder %s97, %s98
      %p112 = scmp.eq.s32.totalorder %s22, 1
      %p113 = por %p111, %p112
      %p115 = scmp.ne.s32.totalorder %s98, %s114
      %p116 = scmp.eq.s32.totalorder %s22, 0
      %p117 = por %p115, %p116
      %p118 = scmp.le.s32.totalorder 1, %s16
      %p119 = scmp.lt.s32.totalorder %s16, 3
      %p120 = pnand %p118, %p119
      %p121 = pneg %p120
      // Predicated region
      $region9: #{tpu_custom_call.1} parent=5 // pred_check
        _
      $region10: #{tpu_custom_call.1} parent=5 // pred_check_branch
        %123 = sbr.rel (%p120) target = $region12
      $region11: #{tpu_custom_call.1} parent=5 // pred_region
        %s124 = ssub.s32 %s16, 1
        // Predicated region
        $region13: #{tpu_custom_call.1} parent=11 // pred_check
          %p125 = pneg %p63
        $region14: #{tpu_custom_call.1} parent=11 // pred_check_branch
          %127 = sbr.rel (%p125) target = $region16
        $region15: #{tpu_custom_call.1} parent=11 // pred_region
          %s129 = ssub.s32 1024, 1024
          %130 = vsyncadd [#allocation6], %s129
          %s131 = sshll.u32 [#allocation5], 4
          %s132 = int_to_ptr.vmem [resolvable:$true] %s131
          %137 = dma.hbm_to_vmem [thread:$0]  %s1, 1024, %s132, [#allocation6], 64, 64, 4
        $region16: #{tpu_custom_call.1} parent=11 // pred_fallthru
          _
        // Predicated region
        $region17: #{tpu_custom_call.1} parent=11 // pred_check
          %p138 = pneg %p84
        $region18: #{tpu_custom_call.1} parent=11 // pred_check_branch
          %140 = sbr.rel (%p138) target = $region20
        $region19: #{tpu_custom_call.1} parent=11 // pred_region
          _
        $region20: #{tpu_custom_call.1} parent=11 // pred_fallthru
          _
      $region12: #{tpu_custom_call.1} parent=5 // pred_fallthru
        _
      %p141 = scmp.lt.s32.totalorder %s16, 2
      // Predicated region
      $region21: #{tpu_custom_call.1} parent=5 // pred_check
        %p142 = pneg %p141
      $region22: #{tpu_custom_call.1} parent=5 // pred_check_branch
        %144 = sbr.rel (%p142) target = $region24
      $region23: #{tpu_custom_call.1} parent=5 // pred_region
        // Predicated region
        $region25: #{tpu_custom_call.1} parent=23 // pred_check
          %p145 = pneg %p36
        $region26: #{tpu_custom_call.1} parent=23 // pred_check_branch
          %147 = sbr.rel (%p145) target = $region28
        $region27: #{tpu_custom_call.1} parent=23 // pred_region
          %s148 = sand.u32 %s26, 1
          %s149 = scalar_lea.sflag [#allocation3], %s148
          %s150 = sand.u32 %s26, 1
          %s151 = smul.addr %s150, 128
          %s152 = scalar_lea.vmem [#allocation2], %s151
          %s153 = smul.u32 32, %s16
          %s155 = ssub.s32 2048, 2048
          %156 = vsyncadd %s149, %s155
          %s157 = smul.addr %s153, 64
          %s158 = scalar_lea.hbm %s0, %s157
          %s159 = sshll.u32 %s152, 4
          %s160 = int_to_ptr.vmem [resolvable:$true] %s159
          %165 = dma.hbm_to_vmem [thread:$0]  %s158, 2048, %s160, %s149, 64, 64, 4
        $region28: #{tpu_custom_call.1} parent=23 // pred_fallthru
          _
      $region24: #{tpu_custom_call.1} parent=5 // pred_fallthru
        _
      %p166 = scmp.le.s32.totalorder 1, %s16
      %p167 = scmp.lt.s32.totalorder %s16, 3
      %p168 = pnand %p166, %p167
      %p169 = pneg %p168
      // Predicated region
      $region29: #{tpu_custom_call.1} parent=5 // pred_check
        _
      $region30: #{tpu_custom_call.1} parent=5 // pred_check_branch
        %171 = sbr.rel (%p168) target = $region32
      $region31: #{tpu_custom_call.1} parent=5 // pred_region
        %s172 = ssub.s32 %s16, 1
        %s173 = sand.u32 %s29, 1
        %s174 = scalar_lea.sflag [#allocation3], %s173
        %s175 = sand.u32 %s29, 1
        %s176 = smul.addr %s175, 128
        %s177 = scalar_lea.vmem [#allocation2], %s176
        // Predicated region
        $region33: #{tpu_custom_call.1} parent=31 // pred_check
          %p178 = pneg %p42
        $region34: #{tpu_custom_call.1} parent=31 // pred_check_branch
          %180 = sbr.rel (%p178) target = $region36
        $region35: #{tpu_custom_call.1} parent=31 // pred_region
          %181 = dma.done %s174, 2048
        $region36: #{tpu_custom_call.1} parent=31 // pred_fallthru
          _
        // Predicated region
        $region37: #{tpu_custom_call.1} parent=31 // pred_check
          %p182 = pneg %p63
        $region38: #{tpu_custom_call.1} parent=31 // pred_check_branch
          %184 = sbr.rel (%p182) target = $region40
        $region39: #{tpu_custom_call.1} parent=31 // pred_region
          %185 = dma.done [#allocation6], 1024
        $region40: #{tpu_custom_call.1} parent=31 // pred_fallthru
          _
        %s186 = sand.u32 %s29, 1
        %s187 = scalar_lea.sflag [#allocation3], %s186
        %s188 = sand.u32 %s29, 1
        %s189 = smul.addr %s188, 128
        %s190 = scalar_lea.vmem [#allocation2], %s189
        %p191 = pneg %p42
        %p192 = pneg %p39
        %p193 = pneg %p63
        %p194 = pneg %p60
        %p195 = pneg %p84
        %p196 = pneg %p81
        %p197 = pneg %p110
        %p198 = pneg %p107
        %s199 = sand.u32 %s97, 1
        %s200 = scalar_lea.sflag [#allocation4], %s199
        %s201 = sand.u32 %s97, 1
        %s202 = smul.addr %s201, 128
        %s203 = scalar_lea.vmem [#allocation7], %s202
        %s204 = smul.u32 32, %s21
        %s205 = smul.u32 32, %s21
        %v207 = vld [vmem:[%s177] sm:$0xf]
        %v208 = vld [vmem:[%s177 + $0x4] sm:$0xf]
        %v209 = vld [vmem:[%s177 + $0x8] sm:$0xf]
        %v210 = vld [vmem:[%s177 + $0xc] sm:$0xf]
        %v211 = vld [vmem:[%s177 + $0x10] sm:$0xf]
        %v212 = vld [vmem:[%s177 + $0x14] sm:$0xf]
        %v213 = vld [vmem:[%s177 + $0x18] sm:$0xf]
        %v214 = vld [vmem:[%s177 + $0x1c] sm:$0xf]
        %v215 = vld [vmem:[%s177 + $0x20] sm:$0xf]
        %v216 = vld [vmem:[%s177 + $0x24] sm:$0xf]
        %v217 = vld [vmem:[%s177 + $0x28] sm:$0xf]
        %v218 = vld [vmem:[%s177 + $0x2c] sm:$0xf]
        %v219 = vld [vmem:[%s177 + $0x30] sm:$0xf]
        %v220 = vld [vmem:[%s177 + $0x34] sm:$0xf]
        %v221 = vld [vmem:[%s177 + $0x38] sm:$0xf]
        %v222 = vld [vmem:[%s177 + $0x3c] sm:$0xf]
        %v223 = vld [vmem:[%s177 + $0x40] sm:$0xf]
        %v224 = vld [vmem:[%s177 + $0x44] sm:$0xf]
        %v225 = vld [vmem:[%s177 + $0x48] sm:$0xf]
        %v226 = vld [vmem:[%s177 + $0x4c] sm:$0xf]
        %v227 = vld [vmem:[%s177 + $0x50] sm:$0xf]
        %v228 = vld [vmem:[%s177 + $0x54] sm:$0xf]
        %v229 = vld [vmem:[%s177 + $0x58] sm:$0xf]
        %v230 = vld [vmem:[%s177 + $0x5c] sm:$0xf]
        %v231 = vld [vmem:[%s177 + $0x60] sm:$0xf]
        %v232 = vld [vmem:[%s177 + $0x64] sm:$0xf]
        %v233 = vld [vmem:[%s177 + $0x68] sm:$0xf]
        %v234 = vld [vmem:[%s177 + $0x6c] sm:$0xf]
        %v235 = vld [vmem:[%s177 + $0x70] sm:$0xf]
        %v236 = vld [vmem:[%s177 + $0x74] sm:$0xf]
        %v237 = vld [vmem:[%s177 + $0x78] sm:$0xf]
        %v238 = vld [vmem:[%s177 + $0x7c] sm:$0xf]
        %v239 = vld [vmem:[#allocation5] sm:$0xf]
        %v240 = vld [vmem:[#allocation5 + $0x4] sm:$0xf]
        %v241 = vld [vmem:[#allocation5 + $0x8] sm:$0xf]
        %v242 = vld [vmem:[#allocation5 + $0xc] sm:$0xf]
        %v243 = vld [vmem:[#allocation5 + $0x10] sm:$0xf]
        %v244 = vld [vmem:[#allocation5 + $0x14] sm:$0xf]
        %v245 = vld [vmem:[#allocation5 + $0x18] sm:$0xf]
        %v246 = vld [vmem:[#allocation5 + $0x1c] sm:$0xf]
        %v247 = vld [vmem:[#allocation5 + $0x20] sm:$0xf]
        %v248 = vld [vmem:[#allocation5 + $0x24] sm:$0xf]
        %v249 = vld [vmem:[#allocation5 + $0x28] sm:$0xf]
        %v250 = vld [vmem:[#allocation5 + $0x2c] sm:$0xf]
        %v251 = vld [vmem:[#allocation5 + $0x30] sm:$0xf]
        %v252 = vld [vmem:[#allocation5 + $0x34] sm:$0xf]
        %v253 = vld [vmem:[#allocation5 + $0x38] sm:$0xf]
        %v254 = vld [vmem:[#allocation5 + $0x3c] sm:$0xf]
        %v255 = vld [vmem:[%s2] sm:$0x1]
        %v257 = vlaneseq
        %v258 = vshrl.u32 %v257, 7
        %v259 = vsub.s32 0, %v258
        %v260 = vrot.slane %v255, %v259
        %v294 = vunpack.c.l.b16 %v207
        %v295 = vunpack.c.l.b16 %v208
        %v296 = vunpack.c.l.b16 %v209
        %v297 = vunpack.c.l.b16 %v210
        %v298 = vunpack.c.l.b16 %v211
        %v299 = vunpack.c.l.b16 %v212
        %v300 = vunpack.c.l.b16 %v213
        %v301 = vunpack.c.l.b16 %v214
        %v302 = vunpack.c.l.b16 %v215
        %v303 = vunpack.c.l.b16 %v216
        %v304 = vunpack.c.l.b16 %v217
        %v305 = vunpack.c.l.b16 %v218
        %v306 = vunpack.c.l.b16 %v219
        %v307 = vunpack.c.l.b16 %v220
        %v308 = vunpack.c.l.b16 %v221
        %v309 = vunpack.c.l.b16 %v222
        %v310 = vunpack.c.l.b16 %v223
        %v311 = vunpack.c.l.b16 %v224
        %v312 = vunpack.c.l.b16 %v225
        %v313 = vunpack.c.l.b16 %v226
        %v314 = vunpack.c.l.b16 %v227
        %v315 = vunpack.c.l.b16 %v228
        %v316 = vunpack.c.l.b16 %v229
        %v317 = vunpack.c.l.b16 %v230
        %v318 = vunpack.c.l.b16 %v231
        %v319 = vunpack.c.l.b16 %v232
        %v320 = vunpack.c.l.b16 %v233
        %v321 = vunpack.c.l.b16 %v234
        %v322 = vunpack.c.l.b16 %v235
        %v323 = vunpack.c.l.b16 %v236
        %v324 = vunpack.c.l.b16 %v237
        %v325 = vunpack.c.l.b16 %v238
        %v326 = vpack.c.b16 %v295, %v294
        %v327 = vpack.c.b16 %v297, %v296
        %v328 = vpack.c.b16 %v299, %v298
        %v329 = vpack.c.b16 %v301, %v300
        %v330 = vpack.c.b16 %v303, %v302
        %v331 = vpack.c.b16 %v305, %v304
        %v332 = vpack.c.b16 %v307, %v306
        %v333 = vpack.c.b16 %v309, %v308
        %v334 = vpack.c.b16 %v311, %v310
        %v335 = vpack.c.b16 %v313, %v312
        %v336 = vpack.c.b16 %v315, %v314
        %v337 = vpack.c.b16 %v317, %v316
        %v338 = vpack.c.b16 %v319, %v318
        %v339 = vpack.c.b16 %v321, %v320
        %v340 = vpack.c.b16 %v323, %v322
        %v341 = vpack.c.b16 %v325, %v324
        %v374 = vunpack.c.l.b16 %v239
        %v375 = vunpack.c.l.b16 %v240
        %v376 = vunpack.c.l.b16 %v241
        %v377 = vunpack.c.l.b16 %v242
        %v378 = vunpack.c.l.b16 %v243
        %v379 = vunpack.c.l.b16 %v244
        %v380 = vunpack.c.l.b16 %v245
        %v381 = vunpack.c.l.b16 %v246
        %v382 = vunpack.c.l.b16 %v247
        %v383 = vunpack.c.l.b16 %v248
        %v384 = vunpack.c.l.b16 %v249
        %v385 = vunpack.c.l.b16 %v250
        %v386 = vunpack.c.l.b16 %v251
        %v387 = vunpack.c.l.b16 %v252
        %v388 = vunpack.c.l.b16 %v253
        %v389 = vunpack.c.l.b16 %v254
        %v390 = vpack.c.b16 %v375, %v374
        %v391 = vpack.c.b16 %v377, %v376
        %v392 = vpack.c.b16 %v379, %v378
        %v393 = vpack.c.b16 %v381, %v380
        %v394 = vpack.c.b16 %v383, %v382
        %v395 = vpack.c.b16 %v385, %v384
        %v396 = vpack.c.b16 %v387, %v386
        %v397 = vpack.c.b16 %v389, %v388
        %406 = vmatprep.subr.bf16.mxu0 0
        %407 = vmatpush1.bf16.msra.mxu0 %v390
        %408 = vmatprep.subr.bf16.mxu0 0
        %409 = vmatpush1.bf16.msra.mxu0 %v391
        %410 = vmatprep.subr.bf16.mxu0 0
        %411 = vmatpush1.bf16.msra.mxu0 %v392
        %412 = vmatprep.subr.bf16.mxu0 0
        %413 = vmatpush1.bf16.msra.mxu0 %v393
        %414 = vmatprep.subr.bf16.mxu0 0
        %415 = vmatpush1.bf16.msra.mxu0 %v394
        %416 = vmatprep.subr.bf16.mxu0 0
        %417 = vmatpush1.bf16.msra.mxu0 %v395
        %418 = vmatprep.subr.bf16.mxu0 0
        %419 = vmatpush1.bf16.msra.mxu0 %v396
        %420 = vmatprep.subr.bf16.mxu0 0
        %421 = vmatpush1.bf16.msra.mxu0 %v397
        %422 = vmatprep.subr.bf16.mxu0 0
        %423 = vmatpush1.bf16.msra.mxu0 0
        %424 = vmatprep.subr.bf16.mxu0 0
        %425 = vmatpush1.bf16.msra.mxu0 0
        %426 = vmatprep.subr.bf16.mxu0 0
        %427 = vmatpush1.bf16.msra.mxu0 0
        %428 = vmatprep.subr.bf16.mxu0 0
        %429 = vmatpush1.bf16.msra.mxu0 0
        %430 = vmatprep.subr.bf16.mxu0 0
        %431 = vmatpush1.bf16.msra.mxu0 0
        %432 = vmatprep.subr.bf16.mxu0 0
        %433 = vmatpush1.bf16.msra.mxu0 0
        %434 = vmatprep.subr.bf16.mxu0 0
        %435 = vmatpush1.bf16.msra.mxu0 0
        %436 = vmatprep.subr.bf16.mxu0 0
        %437 = vmatpush1.bf16.msra.mxu0 0
        %438 = vmatprep.mubr.bf16.mxu0 0
        %439 = vmatmul.mubr.bf16.gmra.mrb[0].mxu0 %v326
        %v440 = vpop.f32.mrb[0].mxu0
        %v441 = vadd.f32 %v260, %v440
        %v442 = vpop.f32.mrb[0].mxu0
        %v443 = vpop.f32.mrb[0].mxu0
        %v444 = vadd.f32 %v260, %v443
        %v445 = vpop.f32.mrb[0].mxu0
        %446 = vmatprep.mubr.bf16.mxu0 0
        %447 = vmatmul.mubr.bf16.gmra.mrb[0].mxu0 %v327
        %v448 = vpop.f32.mrb[0].mxu0
        %v449 = vadd.f32 %v260, %v448
        %v450 = vpop.f32.mrb[0].mxu0
        %v451 = vpop.f32.mrb[0].mxu0
        %v452 = vadd.f32 %v260, %v451
        %v453 = vpop.f32.mrb[0].mxu0
        %454 = vmatprep.mubr.bf16.mxu0 0
        %455 = vmatmul.mubr.bf16.gmra.mrb[0].mxu0 %v328
        %v456 = vpop.f32.mrb[0].mxu0
        %v457 = vadd.f32 %v260, %v456
        %v458 = vpop.f32.mrb[0].mxu0
        %v459 = vpop.f32.mrb[0].mxu0
        %v460 = vadd.f32 %v260, %v459
        %v461 = vpop.f32.mrb[0].mxu0
        %462 = vmatprep.mubr.bf16.mxu0 0
        %463 = vmatmul.mubr.bf16.gmra.mrb[0].mxu0 %v329
        %v464 = vpop.f32.mrb[0].mxu0
        %v465 = vadd.f32 %v260, %v464
        %v466 = vpop.f32.mrb[0].mxu0
        %v467 = vpop.f32.mrb[0].mxu0
        %v468 = vadd.f32 %v260, %v467
        %v469 = vpop.f32.mrb[0].mxu0
        %470 = vmatprep.mubr.bf16.mxu0 0
        %471 = vmatmul.mubr.bf16.gmra.mrb[0].mxu0 %v330
        %v472 = vpop.f32.mrb[0].mxu0
        %v473 = vadd.f32 %v260, %v472
        %v474 = vpop.f32.mrb[0].mxu0
        %v475 = vpop.f32.mrb[0].mxu0
        %v476 = vadd.f32 %v260, %v475
        %v477 = vpop.f32.mrb[0].mxu0
        %478 = vmatprep.mubr.bf16.mxu0 0
        %479 = vmatmul.mubr.bf16.gmra.mrb[0].mxu0 %v331
        %v480 = vpop.f32.mrb[0].mxu0
        %v481 = vadd.f32 %v260, %v480
        %v482 = vpop.f32.mrb[0].mxu0
        %v483 = vpop.f32.mrb[0].mxu0
        %v484 = vadd.f32 %v260, %v483
        %v485 = vpop.f32.mrb[0].mxu0
        %486 = vmatprep.mubr.bf16.mxu0 0
        %487 = vmatmul.mubr.bf16.gmra.mrb[0].mxu0 %v332
        %v488 = vpop.f32.mrb[0].mxu0
        %v489 = vadd.f32 %v260, %v488
        %v490 = vpop.f32.mrb[0].mxu0
        %v491 = vpop.f32.mrb[0].mxu0
        %v492 = vadd.f32 %v260, %v491
        %v493 = vpop.f32.mrb[0].mxu0
        %494 = vmatprep.mubr.bf16.mxu0 0
        %495 = vmatmul.mubr.bf16.gmra.mrb[0].mxu0 %v333
        %v496 = vpop.f32.mrb[0].mxu0
        %v497 = vadd.f32 %v260, %v496
        %v498 = vpop.f32.mrb[0].mxu0
        %v499 = vpop.f32.mrb[0].mxu0
        %v500 = vadd.f32 %v260, %v499
        %v501 = vpop.f32.mrb[0].mxu0
        %502 = vmatprep.mubr.bf16.mxu0 0
        %503 = vmatmul.mubr.bf16.gmra.mrb[0].mxu0 %v334
        %v504 = vpop.f32.mrb[0].mxu0
        %v505 = vadd.f32 %v260, %v504
        %v506 = vpop.f32.mrb[0].mxu0
        %v507 = vpop.f32.mrb[0].mxu0
        %v508 = vadd.f32 %v260, %v507
        %v509 = vpop.f32.mrb[0].mxu0
        %510 = vmatprep.mubr.bf16.mxu0 0
        %511 = vmatmul.mubr.bf16.gmra.mrb[0].mxu0 %v335
        %v512 = vpop.f32.mrb[0].mxu0
        %v513 = vadd.f32 %v260, %v512
        %v514 = vpop.f32.mrb[0].mxu0
        %v515 = vpop.f32.mrb[0].mxu0
        %v516 = vadd.f32 %v260, %v515
        %v517 = vpop.f32.mrb[0].mxu0
        %518 = vmatprep.mubr.bf16.mxu0 0
        %519 = vmatmul.mubr.bf16.gmra.mrb[0].mxu0 %v336
        %v520 = vpop.f32.mrb[0].mxu0
        %v521 = vadd.f32 %v260, %v520
        %v522 = vpop.f32.mrb[0].mxu0
        %v523 = vpop.f32.mrb[0].mxu0
        %v524 = vadd.f32 %v260, %v523
        %v525 = vpop.f32.mrb[0].mxu0
        %526 = vmatprep.mubr.bf16.mxu0 0
        %527 = vmatmul.mubr.bf16.gmra.mrb[0].mxu0 %v337
        %v528 = vpop.f32.mrb[0].mxu0
        %v529 = vadd.f32 %v260, %v528
        %v530 = vpop.f32.mrb[0].mxu0
        %v531 = vpop.f32.mrb[0].mxu0
        %v532 = vadd.f32 %v260, %v531
        %v533 = vpop.f32.mrb[0].mxu0
        %534 = vmatprep.mubr.bf16.mxu0 0
        %535 = vmatmul.mubr.bf16.gmra.mrb[0].mxu0 %v338
        %v536 = vpop.f32.mrb[0].mxu0
        %v537 = vadd.f32 %v260, %v536
        %v538 = vpop.f32.mrb[0].mxu0
        %v539 = vpop.f32.mrb[0].mxu0
        %v540 = vadd.f32 %v260, %v539
        %v541 = vpop.f32.mrb[0].mxu0
        %542 = vmatprep.mubr.bf16.mxu0 0
        %543 = vmatmul.mubr.bf16.gmra.mrb[0].mxu0 %v339
        %v544 = vpop.f32.mrb[0].mxu0
        %v545 = vadd.f32 %v260, %v544
        %v546 = vpop.f32.mrb[0].mxu0
        %v547 = vpop.f32.mrb[0].mxu0
        %v548 = vadd.f32 %v260, %v547
        %v549 = vpop.f32.mrb[0].mxu0
        %550 = vmatprep.mubr.bf16.mxu0 0
        %551 = vmatmul.mubr.bf16.gmra.mrb[0].mxu0 %v340
        %v552 = vpop.f32.mrb[0].mxu0
        %v553 = vadd.f32 %v260, %v552
        %v554 = vpop.f32.mrb[0].mxu0
        %v555 = vpop.f32.mrb[0].mxu0
        %v556 = vadd.f32 %v260, %v555
        %v557 = vpop.f32.mrb[0].mxu0
        %558 = vmatprep.mubr.bf16.mxu0 0
        %559 = vmatmul.mubr.bf16.gmra.mrb[0].mxu0 %v341
        %v560 = vpop.f32.mrb[0].mxu0
        %v561 = vadd.f32 %v260, %v560
        %v562 = vpop.f32.mrb[0].mxu0
        %v563 = vpop.f32.mrb[0].mxu0
        %v564 = vadd.f32 %v260, %v563
        %v565 = vpop.f32.mrb[0].mxu0
        %566 = vdwg.mxu0
        %vm567 = vcmp.ge.f32.partialorder %v441, 0.0
        %vm568 = vcmp.ge.f32.partialorder %v444, 0.0
        %vm569 = vcmp.ge.f32.partialorder %v449, 0.0
        %vm570 = vcmp.ge.f32.partialorder %v452, 0.0
        %vm571 = vcmp.ge.f32.partialorder %v457, 0.0
        %vm572 = vcmp.ge.f32.partialorder %v460, 0.0
        %vm573 = vcmp.ge.f32.partialorder %v465, 0.0
        %vm574 = vcmp.ge.f32.partialorder %v468, 0.0
        %vm575 = vcmp.ge.f32.partialorder %v473, 0.0
        %vm576 = vcmp.ge.f32.partialorder %v476, 0.0
        %vm577 = vcmp.ge.f32.partialorder %v481, 0.0
        %vm578 = vcmp.ge.f32.partialorder %v484, 0.0
        %vm579 = vcmp.ge.f32.partialorder %v489, 0.0
        %vm580 = vcmp.ge.f32.partialorder %v492, 0.0
        %vm581 = vcmp.ge.f32.partialorder %v497, 0.0
        %vm582 = vcmp.ge.f32.partialorder %v500, 0.0
        %vm583 = vcmp.ge.f32.partialorder %v505, 0.0
        %vm584 = vcmp.ge.f32.partialorder %v508, 0.0
        %vm585 = vcmp.ge.f32.partialorder %v513, 0.0
        %vm586 = vcmp.ge.f32.partialorder %v516, 0.0
        %vm587 = vcmp.ge.f32.partialorder %v521, 0.0
        %vm588 = vcmp.ge.f32.partialorder %v524, 0.0
        %vm589 = vcmp.ge.f32.partialorder %v529, 0.0
        %vm590 = vcmp.ge.f32.partialorder %v532, 0.0
        %vm591 = vcmp.ge.f32.partialorder %v537, 0.0
        %vm592 = vcmp.ge.f32.partialorder %v540, 0.0
        %vm593 = vcmp.ge.f32.partialorder %v545, 0.0
        %vm594 = vcmp.ge.f32.partialorder %v548, 0.0
        %vm595 = vcmp.ge.f32.partialorder %v553, 0.0
        %vm596 = vcmp.ge.f32.partialorder %v556, 0.0
        %vm597 = vcmp.ge.f32.partialorder %v561, 0.0
        %vm598 = vcmp.ge.f32.partialorder %v564, 0.0
        %v599 = vmul.f32 %v441, 0.2
        %v600 = vmul.f32 %v444, 0.2
        %v601 = vmul.f32 %v449, 0.2
        %v602 = vmul.f32 %v452, 0.2
        %v603 = vmul.f32 %v457, 0.2
        %v604 = vmul.f32 %v460, 0.2
        %v605 = vmul.f32 %v465, 0.2
        %v606 = vmul.f32 %v468, 0.2
        %v607 = vmul.f32 %v473, 0.2
        %v608 = vmul.f32 %v476, 0.2
        %v609 = vmul.f32 %v481, 0.2
        %v610 = vmul.f32 %v484, 0.2
        %v611 = vmul.f32 %v489, 0.2
        %v612 = vmul.f32 %v492, 0.2
        %v613 = vmul.f32 %v497, 0.2
        %v614 = vmul.f32 %v500, 0.2
        %v615 = vmul.f32 %v505, 0.2
        %v616 = vmul.f32 %v508, 0.2
        %v617 = vmul.f32 %v513, 0.2
        %v618 = vmul.f32 %v516, 0.2
        %v619 = vmul.f32 %v521, 0.2
        %v620 = vmul.f32 %v524, 0.2
        %v621 = vmul.f32 %v529, 0.2
        %v622 = vmul.f32 %v532, 0.2
        %v623 = vmul.f32 %v537, 0.2
        %v624 = vmul.f32 %v540, 0.2
        %v625 = vmul.f32 %v545, 0.2
        %v626 = vmul.f32 %v548, 0.2
        %v627 = vmul.f32 %v553, 0.2
        %v628 = vmul.f32 %v556, 0.2
        %v629 = vmul.f32 %v561, 0.2
        %v630 = vmul.f32 %v564, 0.2
        %v631 = vsel %vm567, %v441, %v599
        %v632 = vsel %vm568, %v444, %v600
        %v633 = vsel %vm569, %v449, %v601
        %v634 = vsel %vm570, %v452, %v602
        %v635 = vsel %vm571, %v457, %v603
        %v636 = vsel %vm572, %v460, %v604
        %v637 = vsel %vm573, %v465, %v605
        %v638 = vsel %vm574, %v468, %v606
        %v639 = vsel %vm575, %v473, %v607
        %v640 = vsel %vm576, %v476, %v608
        %v641 = vsel %vm577, %v481, %v609
        %v642 = vsel %vm578, %v484, %v610
        %v643 = vsel %vm579, %v489, %v611
        %v644 = vsel %vm580, %v492, %v612
        %v645 = vsel %vm581, %v497, %v613
        %v646 = vsel %vm582, %v500, %v614
        %v647 = vsel %vm583, %v505, %v615
        %v648 = vsel %vm584, %v508, %v616
        %v649 = vsel %vm585, %v513, %v617
        %v650 = vsel %vm586, %v516, %v618
        %v651 = vsel %vm587, %v521, %v619
        %v652 = vsel %vm588, %v524, %v620
        %v653 = vsel %vm589, %v529, %v621
        %v654 = vsel %vm590, %v532, %v622
        %v655 = vsel %vm591, %v537, %v623
        %v656 = vsel %vm592, %v540, %v624
        %v657 = vsel %vm593, %v545, %v625
        %v658 = vsel %vm594, %v548, %v626
        %v659 = vsel %vm595, %v553, %v627
        %v660 = vsel %vm596, %v556, %v628
        %v661 = vsel %vm597, %v561, %v629
        %v662 = vsel %vm598, %v564, %v630
        %v663 = vmul.f32 %v631, 1.4142135
        %v664 = vmul.f32 %v632, 1.4142135
        %v665 = vmul.f32 %v633, 1.4142135
        %v666 = vmul.f32 %v634, 1.4142135
        %v667 = vmul.f32 %v635, 1.4142135
        %v668 = vmul.f32 %v636, 1.4142135
        %v669 = vmul.f32 %v637, 1.4142135
        %v670 = vmul.f32 %v638, 1.4142135
        %v671 = vmul.f32 %v639, 1.4142135
        %v672 = vmul.f32 %v640, 1.4142135
        %v673 = vmul.f32 %v641, 1.4142135
        %v674 = vmul.f32 %v642, 1.4142135
        %v675 = vmul.f32 %v643, 1.4142135
        %v676 = vmul.f32 %v644, 1.4142135
        %v677 = vmul.f32 %v645, 1.4142135
        %v678 = vmul.f32 %v646, 1.4142135
        %v679 = vmul.f32 %v647, 1.4142135
        %v680 = vmul.f32 %v648, 1.4142135
        %v681 = vmul.f32 %v649, 1.4142135
        %v682 = vmul.f32 %v650, 1.4142135
        %v683 = vmul.f32 %v651, 1.4142135
        %v684 = vmul.f32 %v652, 1.4142135
        %v685 = vmul.f32 %v653, 1.4142135
        %v686 = vmul.f32 %v654, 1.4142135
        %v687 = vmul.f32 %v655, 1.4142135
        %v688 = vmul.f32 %v656, 1.4142135
        %v689 = vmul.f32 %v657, 1.4142135
        %v690 = vmul.f32 %v658, 1.4142135
        %v691 = vmul.f32 %v659, 1.4142135
        %v692 = vmul.f32 %v660, 1.4142135
        %v693 = vmul.f32 %v661, 1.4142135
        %v694 = vmul.f32 %v662, 1.4142135
        %v695 = vpack.c.bf16 %v664, %v663
        %v696 = vpack.c.bf16 %v666, %v665
        %v697 = vpack.c.bf16 %v668, %v667
        %v698 = vpack.c.bf16 %v670, %v669
        %v699 = vpack.c.bf16 %v672, %v671
        %v700 = vpack.c.bf16 %v674, %v673
        %v701 = vpack.c.bf16 %v676, %v675
        %v702 = vpack.c.bf16 %v678, %v677
        %v703 = vpack.c.bf16 %v680, %v679
        %v704 = vpack.c.bf16 %v682, %v681
        %v705 = vpack.c.bf16 %v684, %v683
        %v706 = vpack.c.bf16 %v686, %v685
        %v707 = vpack.c.bf16 %v688, %v687
        %v708 = vpack.c.bf16 %v690, %v689
        %v709 = vpack.c.bf16 %v692, %v691
        %v710 = vpack.c.bf16 %v694, %v693
        %v727 = vunpack.c.l.b16 %v695
        %v728 = vunpack.c.h.b16 %v695
        %v729 = vunpack.c.l.b16 %v696
        %v730 = vunpack.c.h.b16 %v696
        %v731 = vunpack.c.l.b16 %v697
        %v732 = vunpack.c.h.b16 %v697
        %v733 = vunpack.c.l.b16 %v698
        %v734 = vunpack.c.h.b16 %v698
        %v735 = vunpack.c.l.b16 %v699
        %v736 = vunpack.c.h.b16 %v699
        %v737 = vunpack.c.l.b16 %v700
        %v738 = vunpack.c.h.b16 %v700
        %v739 = vunpack.c.l.b16 %v701
        %v740 = vunpack.c.h.b16 %v701
        %v741 = vunpack.c.l.b16 %v702
        %v742 = vunpack.c.h.b16 %v702
        %v743 = vunpack.c.l.b16 %v703
        %v744 = vunpack.c.h.b16 %v703
        %v745 = vunpack.c.l.b16 %v704
        %v746 = vunpack.c.h.b16 %v704
        %v747 = vunpack.c.l.b16 %v705
        %v748 = vunpack.c.h.b16 %v705
        %v749 = vunpack.c.l.b16 %v706
        %v750 = vunpack.c.h.b16 %v706
        %v751 = vunpack.c.l.b16 %v707
        %v752 = vunpack.c.h.b16 %v707
        %v753 = vunpack.c.l.b16 %v708
        %v754 = vunpack.c.h.b16 %v708
        %v755 = vunpack.c.l.b16 %v709
        %v756 = vunpack.c.h.b16 %v709
        %v757 = vunpack.c.l.b16 %v710
        %v758 = vunpack.c.h.b16 %v710
        %v759 = vpack.c.b16 %v727, %v727
        %v760 = vpack.c.b16 %v728, %v728
        %v761 = vpack.c.b16 %v729, %v729
        %v762 = vpack.c.b16 %v730, %v730
        %v763 = vpack.c.b16 %v731, %v731
        %v764 = vpack.c.b16 %v732, %v732
        %v765 = vpack.c.b16 %v733, %v733
        %v766 = vpack.c.b16 %v734, %v734
        %v767 = vpack.c.b16 %v735, %v735
        %v768 = vpack.c.b16 %v736, %v736
        %v769 = vpack.c.b16 %v737, %v737
        %v770 = vpack.c.b16 %v738, %v738
        %v771 = vpack.c.b16 %v739, %v739
        %v772 = vpack.c.b16 %v740, %v740
        %v773 = vpack.c.b16 %v741, %v741
        %v774 = vpack.c.b16 %v742, %v742
        %v775 = vpack.c.b16 %v743, %v743
        %v776 = vpack.c.b16 %v744, %v744
        %v777 = vpack.c.b16 %v745, %v745
        %v778 = vpack.c.b16 %v746, %v746
        %v779 = vpack.c.b16 %v747, %v747
        %v780 = vpack.c.b16 %v748, %v748
        %v781 = vpack.c.b16 %v749, %v749
        %v782 = vpack.c.b16 %v750, %v750
        %v783 = vpack.c.b16 %v751, %v751
        %v784 = vpack.c.b16 %v752, %v752
        %v785 = vpack.c.b16 %v753, %v753
        %v786 = vpack.c.b16 %v754, %v754
        %v787 = vpack.c.b16 %v755, %v755
        %v788 = vpack.c.b16 %v756, %v756
        %v789 = vpack.c.b16 %v757, %v757
        %v790 = vpack.c.b16 %v758, %v758
        %823 = vst [vmem:[%s203] sm:$0xf] %v759
        %824 = vst [vmem:[%s203 + $0x4] sm:$0xf] %v760
        %825 = vst [vmem:[%s203 + $0x8] sm:$0xf] %v761
        %826 = vst [vmem:[%s203 + $0xc] sm:$0xf] %v762
        %827 = vst [vmem:[%s203 + $0x10] sm:$0xf] %v763
        %828 = vst [vmem:[%s203 + $0x14] sm:$0xf] %v764
        %829 = vst [vmem:[%s203 + $0x18] sm:$0xf] %v765
        %830 = vst [vmem:[%s203 + $0x1c] sm:$0xf] %v766
        %831 = vst [vmem:[%s203 + $0x20] sm:$0xf] %v767
        %832 = vst [vmem:[%s203 + $0x24] sm:$0xf] %v768
        %833 = vst [vmem:[%s203 + $0x28] sm:$0xf] %v769
        %834 = vst [vmem:[%s203 + $0x2c] sm:$0xf] %v770
        %835 = vst [vmem:[%s203 + $0x30] sm:$0xf] %v771
        %836 = vst [vmem:[%s203 + $0x34] sm:$0xf] %v772
        %837 = vst [vmem:[%s203 + $0x38] sm:$0xf] %v773
        %838 = vst [vmem:[%s203 + $0x3c] sm:$0xf] %v774
        %839 = vst [vmem:[%s203 + $0x40] sm:$0xf] %v775
        %840 = vst [vmem:[%s203 + $0x44] sm:$0xf] %v776
        %841 = vst [vmem:[%s203 + $0x48] sm:$0xf] %v777
        %842 = vst [vmem:[%s203 + $0x4c] sm:$0xf] %v778
        %843 = vst [vmem:[%s203 + $0x50] sm:$0xf] %v779
        %844 = vst [vmem:[%s203 + $0x54] sm:$0xf] %v780
        %845 = vst [vmem:[%s203 + $0x58] sm:$0xf] %v781
        %846 = vst [vmem:[%s203 + $0x5c] sm:$0xf] %v782
        %847 = vst [vmem:[%s203 + $0x60] sm:$0xf] %v783
        %848 = vst [vmem:[%s203 + $0x64] sm:$0xf] %v784
        %849 = vst [vmem:[%s203 + $0x68] sm:$0xf] %v785
        %850 = vst [vmem:[%s203 + $0x6c] sm:$0xf] %v786
        %851 = vst [vmem:[%s203 + $0x70] sm:$0xf] %v787
        %852 = vst [vmem:[%s203 + $0x74] sm:$0xf] %v788
        %853 = vst [vmem:[%s203 + $0x78] sm:$0xf] %v789
        %854 = vst [vmem:[%s203 + $0x7c] sm:$0xf] %v790
        %s855 = sand.u32 %s97, 1
        %s856 = scalar_lea.sflag [#allocation4], %s855
        %s857 = sand.u32 %s97, 1
        %s858 = smul.addr %s857, 128
        %s859 = scalar_lea.vmem [#allocation7], %s858
        // Predicated region
        $region41: #{tpu_custom_call.1} parent=31 // pred_check
          %p860 = pneg %p107
        $region42: #{tpu_custom_call.1} parent=31 // pred_check_branch
          %862 = sbr.rel (%p860) target = $region44
        $region43: #{tpu_custom_call.1} parent=31 // pred_region
          %s863 = smul.u32 32, %s21
          %s865 = ssub.s32 2048, 2048
          %866 = vsyncadd %s856, %s865
          %s867 = smul.addr %s863, 64
          %s868 = scalar_lea.hbm %s3, %s867
          %s869 = sshll.u32 %s859, 4
          %s870 = int_to_ptr.vmem [resolvable:$true] %s869
          %875 = dma.vmem_to_hbm [thread:$0]  %s870, 2048, %s868, %s856, 64, 64, 4
        $region44: #{tpu_custom_call.1} parent=31 // pred_fallthru
          _
      $region32: #{tpu_custom_call.1} parent=5 // pred_fallthru
        _
      %p876 = scmp.le.s32.totalorder 2, %s16
      // Predicated region
      $region45: #{tpu_custom_call.1} parent=5 // pred_check
        %p877 = pneg %p876
      $region46: #{tpu_custom_call.1} parent=5 // pred_check_branch
        %879 = sbr.rel (%p877) target = $region48
      $region47: #{tpu_custom_call.1} parent=5 // pred_region
        %s880 = ssub.s32 %s16, 2
        // Predicated region
        $region49: #{tpu_custom_call.1} parent=47 // pred_check
          %p881 = pneg %p113
        $region50: #{tpu_custom_call.1} parent=47 // pred_check_branch
          %883 = sbr.rel (%p881) target = $region52
        $region51: #{tpu_custom_call.1} parent=47 // pred_region
          %s884 = sand.u32 %s98, 1
          %s885 = scalar_lea.sflag [#allocation4], %s884
          %s886 = sand.u32 %s98, 1
          %s887 = smul.addr %s886, 128
          %s888 = scalar_lea.vmem [#allocation7], %s887
          %889 = dma.done %s885, 2048
        $region52: #{tpu_custom_call.1} parent=47 // pred_fallthru
          _
      $region48: #{tpu_custom_call.1} parent=5 // pred_fallthru
        _
    $region6: #{tpu_custom_call.1} parent=1 // loop_footer
      %s20 = sadd.s32 1, %s16
    $region7: #{tpu_custom_call.1} parent=1 // loop_footer_branch
      %15 = sbr.rel target = $region3
    $region8: #{tpu_custom_call.1} parent=1 // loop_exit
      _
    %890 = vsyncpa [#allocation3], 1
    %s891 = scalar_lea.sflag [#allocation3], 1
    %892 = vsyncpa %s891, 1
    %893 = vsyncpa [#allocation6], 1
    %894 = vsyncpa [#allocation4], 1
    %s895 = scalar_lea.sflag [#allocation4], 1
    %896 = vsyncpa %s895, 1

</llo_original>
